<compile_context>
chip_gen: v5e
topology: v5e:2x2
jax: 0.10.0
libtpu: 0.0.40
codegen_flags: <defaults>
</compile_context>

<pallas_src>
import functools

import numpy as np

import jax
import jax.numpy as jnp
from jax.experimental import pallas as pl
from jax.experimental.pallas import tpu as pltpu


def _round_up(x, m):
    return ((x + m - 1) // m) * m


def _rgcn_kernel_aw(r_idx_ref, s_idx_ref, cnt_ref, h_src_ref, h_dst_ref,
                    w_ref, w0_ref, a_ref, out_ref, acc_ref, *, w_resident):
    """fi <= fo path:  acc += (A_r @ H_src) @ W_r.

    Grid: (dst_tile i [parallel], compact block j [reduction]).
    r_idx/s_idx/cnt: SMEM int32 scalar-prefetch tables (block compaction).
    """
    i = pl.program_id(0)
    j = pl.program_id(1)
    nj = pl.num_programs(1)

    @pl.when(j == 0)
    def _init():
        acc_ref[...] = jnp.zeros_like(acc_ref)

    # Only accumulate real (non-padding) compacted blocks.  Padding entries
    # repeat the previous block index, so their DMAs are already elided.
    @pl.when(j < cnt_ref[i])
    def _accumulate():
        a = a_ref[0]
        ah = jnp.dot(a, h_src_ref[...], preferred_element_type=jnp.float32)
        if w_resident:
            w = w_ref[r_idx_ref[i * nj + j]]   # whole weight stack is VMEM-resident
        else:
            w = w_ref[0]                        # streamed per block via index_map
        acc_ref[...] += jnp.dot(ah.astype(a.dtype), w,
                                preferred_element_type=jnp.float32)

    @pl.when(j == nj - 1)
    def _finalize():
        self_term = jnp.dot(h_dst_ref[...], w0_ref[...],
                            preferred_element_type=jnp.float32)
        # TODO(synk): activation is hard-coded to ReLU (nn.Module takes it as a
        # parameter).
        out_ref[...] = jnp.maximum(acc_ref[...] + self_term,
                                   0.0).astype(out_ref.dtype)


def _rgcn_kernel_pre(r_idx_ref, s_idx_ref, cnt_ref, hw_ref, h_dst_ref,
                     w0_ref, a_ref, out_ref, acc_ref):
    """fi > fo path: HW_r = H @ W_r precomputed outside;  acc += A_r @ HW_r."""
    i = pl.program_id(0)
    j = pl.program_id(1)
    nj = pl.num_programs(1)

    @pl.when(j == 0)
    def _init():
        acc_ref[...] = jnp.zeros_like(acc_ref)

    @pl.when(j < cnt_ref[i])
    def _accumulate():
        acc_ref[...] += jnp.dot(a_ref[0], hw_ref[0],
                                preferred_element_type=jnp.float32)

    @pl.when(j == nj - 1)
    def _finalize():
        self_term = jnp.dot(h_dst_ref[...], w0_ref[...],
                            preferred_element_type=jnp.float32)
        out_ref[...] = jnp.maximum(acc_ref[...] + self_term,
                                   0.0).astype(out_ref.dtype)


def layer_rgcn_forward(h, weight, w0, src, dst, edge_id, norm, *,
                       node_tile=512, compute_dtype=jnp.bfloat16,
                       w_resident_bytes=4 * 1024 * 1024):
    """RGCN layer forward.

    h: (N, in_feat); weight: (R, in_feat, out_feat); w0: (in_feat, out_feat);
    src/dst/edge_id/norm: (E,) edge lists (as in the DGL graph).
    """
    N, in_feat = h.shape
    R = weight.shape[0]
    out_feat = w0.shape[1]
    out_dtype = h.dtype

    if R == 0:
        # No relations: only the self-connection survives.
        out = jnp.maximum(h.astype(jnp.float32) @ w0.astype(jnp.float32), 0.0)
        return out.astype(out_dtype)

    # ---- lane-dense feature padding and node tiling (zeros keep math exact) --
    node_tile = _round_up(max(node_tile, 128), 128)
    fi = _round_up(in_feat, 128)
    fo = _round_up(out_feat, 128)
    if N <= node_tile:
        tm = ts = _round_up(N, 128)
        n_pad = tm
    else:
        tm = ts = node_tile
        n_pad = _round_up(N, node_tile)
    nt_d = n_pad // tm
    nt_s = n_pad // ts

    h_p = jnp.zeros((n_pad, fi), compute_dtype).at[:N, :in_feat].set(
        h.astype(compute_dtype))
    w_p = jnp.zeros((R, fi, fo), compute_dtype).at[:, :in_feat, :out_feat].set(
        weight.astype(compute_dtype))
    w0_p = jnp.zeros((fi, fo), compute_dtype).at[:in_feat, :out_feat].set(
        w0.astype(compute_dtype))

    # Dense normalized adjacency A[r, dst, src]: scatter-add edge norms in f32
    # (exact), single cast to the compute dtype.  Equivalent to DGL's
    # gather/scatter message passing with fn.sum aggregation.
    adj_p = (jnp.zeros((R, n_pad, n_pad), jnp.float32)
             .at[edge_id, dst, src].add(norm.astype(jnp.float32))
             .astype(compute_dtype))

    # ---- block compaction from the edge lists (O(E), host side) -------------
    src_np = np.asarray(src)
    dst_np = np.asarray(dst)
    eid_np = np.asarray(edge_id)
    nz = np.zeros((nt_d, R, nt_s), dtype=bool)
    if src_np.size:
        nz[dst_np // tm, eid_np, src_np // ts] = True
    counts_np = nz.reshape(nt_d, -1).sum(axis=1).astype(np.int32)
    max_nnz = max(int(counts_np.max()), 1)

    r_tbl = np.zeros((nt_d, max_nnz), np.int32)
    s_tbl = np.zeros((nt_d, max_nnz), np.int32)
    for i in range(nt_d):
        ss_i, rr_i = np.nonzero(nz[i].T)     # sorted by src tile, then relation
        c = int(ss_i.size)
        if c:
            r_tbl[i, :c] = rr_i
            s_tbl[i, :c] = ss_i
            r_tbl[i, c:] = rr_i[-1]          # repeat last valid block -> no DMA
            s_tbl[i, c:] = ss_i[-1]
    r_flat = jnp.asarray(r_tbl.reshape(-1))
    s_flat = jnp.asarray(s_tbl.reshape(-1))
    counts = jnp.asarray(counts_np)
    nnz_total = int(counts_np.sum())

    mn = max_nnz
    grid = (nt_d, mn)

    # Common specs (index_maps receive the three scalar-prefetch refs).
    h_dst_spec = pl.BlockSpec((tm, fi), lambda i, j, rr, ss, cc: (i, 0))
    w0_spec = pl.BlockSpec((fi, fo), lambda i, j, rr, ss, cc: (0, 0))
    a_spec = pl.BlockSpec(
        (1, tm, ts),
        lambda i, j, rr, ss, cc: (rr[i * mn + j], i, ss[i * mn + j]))
    out_spec = pl.BlockSpec((tm, fo), lambda i, j, rr, ss, cc: (i, 0))
    scratch = [pltpu.VMEM((tm, fo), jnp.float32)]     # f32 accumulator

    compiler_params = pltpu.CompilerParams(
        dimension_semantics=("parallel", "arbitrary"))

    a_first = fi <= fo
    self_flops = nt_d * 2 * tm * fi * fo
    common_bytes = n_pad * fi * 2 + fi * fo * 2 + n_pad * fo * 2

    if a_first:
        # (A_r @ H) @ W_r inside the kernel; W stack resident in VMEM if small.
        w_resident = (R * fi * fo * 2) <= w_resident_bytes
        if w_resident:
            # On v7x, pipeline_mode=pl.Buffered(1) here would reclaim the
            # second (never used) buffer of this constant-index operand.
            w_spec = pl.BlockSpec((R, fi, fo), lambda i, j, rr, ss, cc: (0, 0, 0))
        else:
            w_spec = pl.BlockSpec(
                (1, fi, fo), lambda i, j, rr, ss, cc: (rr[i * mn + j], 0, 0))
        h_src_spec = pl.BlockSpec(
            (ts, fi), lambda i, j, rr, ss, cc: (ss[i * mn + j], 0))

        cost = pl.CostEstimate(
            flops=nnz_total * (2 * tm * ts * fi + 2 * tm * fi * fo) + self_flops,
            transcendentals=0,
            bytes_accessed=nnz_total * (tm * ts + ts * fi) * 2
            + R * fi * fo * 2 + common_bytes)

        kernel = functools.partial(_rgcn_kernel_aw, w_resident=w_resident)
        out_p = pl.pallas_call(
            kernel,
            out_shape=jax.ShapeDtypeStruct((n_pad, fo), compute_dtype),
            grid_spec=pltpu.PrefetchScalarGridSpec(
                num_scalar_prefetch=3,
                grid=grid,
                in_specs=[h_src_spec, h_dst_spec, w_spec, w0_spec, a_spec],
                out_specs=out_spec,
                scratch_shapes=scratch),
            compiler_params=compiler_params,
            cost_estimate=cost,
        )(r_flat, s_flat, counts, h_p, h_p, w_p, w0_p, adj_p)
    else:
        # fi > fo: precompute HW_r = H @ W_r once (depends only on (r, src));
        # the kernel then contracts the O(N^2) matmul against fo = min(fi, fo).
        hw_p = jnp.einsum("nf,rfg->rng", h_p, w_p,
                          preferred_element_type=jnp.float32).astype(compute_dtype)
        hw_spec = pl.BlockSpec(
            (1, ts, fo),
            lambda i, j, rr, ss, cc: (rr[i * mn + j], ss[i * mn + j], 0))

        cost = pl.CostEstimate(
            flops=nnz_total * 2 * tm * ts * fo + self_flops,
            transcendentals=0,
            bytes_accessed=nnz_total * (tm * ts + ts * fo) * 2 + common_bytes)

        out_p = pl.pallas_call(
            _rgcn_kernel_pre,
            out_shape=jax.ShapeDtypeStruct((n_pad, fo), compute_dtype),
            grid_spec=pltpu.PrefetchScalarGridSpec(
                num_scalar_prefetch=3,
                grid=grid,
                in_specs=[hw_spec, h_dst_spec, w0_spec, a_spec],
                out_specs=out_spec,
                scratch_shapes=scratch),
            compiler_params=compiler_params,
            cost_estimate=cost,
        )(r_flat, s_flat, counts, hw_p, h_p, w0_p, adj_p)

    return out_p[:N, :out_feat].astype(out_dtype)


def _reference(h, weight, w0, adj, compute_dtype=jnp.bfloat16):
    """Pure-JAX reference of the same math on the bf16-quantized operands."""
    q = lambda x: x.astype(compute_dtype).astype(jnp.float32)
    h_sum = jnp.einsum("rvu,uf,rfg->vg", q(adj), q(h), q(weight))
    return jnp.maximum(q(h) @ q(w0) + h_sum, 0.0)


def _run_case(key, N, E, in_feat, out_feat, rel_num, node_tile, atol, rtol):
    k_h, k_w, k_w0, k_src, k_dst, k_rel, k_norm = jax.random.split(key, 7)

    h = jax.random.normal(k_h, (N, in_feat), dtype=jnp.float32)
    w_scale = (2.0 / (in_feat + out_feat)) ** 0.5
    weight = w_scale * jax.random.normal(
        k_w, (rel_num, in_feat, out_feat), dtype=jnp.float32)
    w0 = w_scale * jax.random.normal(k_w0, (in_feat, out_feat), dtype=jnp.float32)

    # Synthetic edges: src, dst, relation id, per-edge norm.
    src = jax.random.randint(k_src, (E,), 0, N)
    dst = jax.random.randint(k_dst, (E,), 0, N)
    edge_id = jax.random.randint(k_rel, (E,), 0, rel_num)
    norm = jax.random.uniform(k_norm, (E,), minval=0.1, maxval=1.0,
                              dtype=jnp.float32)

    out = layer_rgcn_forward(h, weight, w0, src, dst, edge_id, norm,
                             node_tile=node_tile)
    out = jax.block_until_ready(out)

    # Reference on the dense per-relation adjacency (same math as DGL's
    # gather/scatter with fn.sum).
    adj = jnp.zeros((rel_num, N, N), dtype=jnp.float32)
    adj = adj.at[edge_id, dst, src].add(norm)
    ref = _reference(h, weight, w0, adj)

    assert out.shape == ref.shape, "shape mismatch vs reference"
    assert jnp.allclose(out, ref, atol=atol, rtol=rtol), "mismatch vs reference"


if __name__ == "__main__":
    key = jax.random.PRNGKey(0)
    k1, k2 = jax.random.split(key)

    # Case 1: small graph, in_feat < out_feat -> (A@H)@W path, single node tile.
    _run_case(k1, N=48, E=200, in_feat=32, out_feat=48, rel_num=4,
              node_tile=512, atol=3e-2, rtol=3e-2)

    # Case 2: multi-tile grid + block compaction, in_feat > out_feat -> the
    # precomputed H@W path (small node_tile just to exercise the tiled grid).
    _run_case(k2, N=300, E=1200, in_feat=160, out_feat=32, rel_num=3,
              node_tile=128, atol=3e-2, rtol=3e-2)

    print("KERNEL_OK")
</pallas_src>

<mosaic_0001>
module attributes {stable_mosaic.version = 11 : i64} {
  func.func @_rgcn_kernel_aw(%arg0: i32, %arg1: i32, %arg2: memref<4xi32, #tpu.memory_space<smem>>, %arg3: memref<4xi32, #tpu.memory_space<smem>>, %arg4: memref<1xi32, #tpu.memory_space<smem>>, %arg5: memref<128x128xbf16, #tpu.memory_space<vmem>>, %arg6: memref<128x128xbf16, #tpu.memory_space<vmem>>, %arg7: memref<4x128x128xbf16, #tpu.memory_space<vmem>>, %arg8: memref<128x128xbf16, #tpu.memory_space<vmem>>, %arg9: memref<1x128x128xbf16, #tpu.memory_space<vmem>>, %arg10: memref<128x128xbf16, #tpu.memory_space<vmem>>, %arg11: memref<128x128xf32, #tpu.memory_space<vmem>>) attributes {dimension_semantics = [#tpu.dimension_semantics<parallel>, #tpu.dimension_semantics<arbitrary>], iteration_bounds = array<i64: 1, 4>, scalar_prefetch = 3 : i64, scratch_operands = 1 : i64, tpu.core_type = #tpu.core_type<tc>, window_params = [{transform_indices = @transform_0, window_bounds = array<i64: 128, 128>}, {transform_indices = @transform_1, window_bounds = array<i64: 128, 128>}, {pipeline_mode = #tpu.pipeline_mode<synchronous>, transform_indices = @transform_2, window_bounds = array<i64: 4, 128, 128>}, {pipeline_mode = #tpu.pipeline_mode<synchronous>, transform_indices = @transform_3, window_bounds = array<i64: 128, 128>}, {transform_indices = @transform_4, window_bounds = array<i64: 1, 128, 128>}, {transform_indices = @transform_5, window_bounds = array<i64: 128, 128>}]} {
    %c0_i32 = arith.constant 0 : i32
    %0 = arith.cmpi eq, %arg1, %c0_i32 : i32
    %1 = arith.extui %0 : i1 to i32
    %c0_i32_0 = arith.constant 0 : i32
    %2 = arith.cmpi ne, %1, %c0_i32_0 : i32
    scf.if %2 {
      %cst = arith.constant 0.000000e+00 : f32
      %11 = vector.broadcast %cst : f32 to vector<128x128xf32>
      %c0 = arith.constant 0 : index
      %c0_3 = arith.constant 0 : index
      %12 = vector.load %arg11[%c0, %c0_3] : memref<128x128xf32, #tpu.memory_space<vmem>>, vector<128x128xf32>
      tpu.vector_store %arg11[%c0, %c0_3], %11 {strides = array<i32>} : memref<128x128xf32, #tpu.memory_space<vmem>>, vector<128x128xf32>,
    } else {
    }
    %3 = arith.index_cast %arg0 : i32 to index
    %4 = memref.load %arg4[%3] : memref<1xi32, #tpu.memory_space<smem>>
    %5 = arith.cmpi slt, %arg1, %4 : i32
    %6 = arith.extui %5 : i1 to i32
    %c0_i32_1 = arith.constant 0 : i32
    %7 = arith.cmpi ne, %6, %c0_i32_1 : i32
    scf.if %7 {
      %c0 = arith.constant 0 : index
      %c0_3 = arith.constant 0 : index
      %c0_4 = arith.constant 0 : index
      %11 = vector.load %arg9[%c0, %c0_3, %c0_4] : memref<1x128x128xbf16, #tpu.memory_space<vmem>>, vector<1x128x128xbf16>
      %12 = vector.shape_cast %11 : vector<1x128x128xbf16> to vector<128x128xbf16>
      %c0_5 = arith.constant 0 : index
      %c0_6 = arith.constant 0 : index
      %13 = vector.load %arg5[%c0_5, %c0_6] : memref<128x128xbf16, #tpu.memory_space<vmem>>, vector<128x128xbf16>
      %cst = arith.constant dense<0.000000e+00> : vector<128x128xf32>
      %14 = tpu.matmul %12, %13, %cst {dimension_numbers = #tpu.dot_dimension_numbers<[1], [0], [0], [1], [0, 0, 1, 1], [], []>} : vector<128x128xbf16>, vector<128x128xbf16>, vector<128x128xf32> -> vector<128x128xf32>
      %c4_i32 = arith.constant 4 : i32
      %15 = arith.muli %arg0, %c4_i32 : i32
      %16 = arith.addi %15, %arg1 : i32
      %17 = arith.index_cast %16 : i32 to index
      %18 = memref.load %arg2[%17] : memref<4xi32, #tpu.memory_space<smem>>
      %19 = arith.index_cast %18 : i32 to index
      %c0_7 = arith.constant 0 : index
      %c0_8 = arith.constant 0 : index
      %20 = vector.load %arg7[%19, %c0_7, %c0_8] : memref<4x128x128xbf16, #tpu.memory_space<vmem>>, vector<1x128x128xbf16>
      %21 = vector.shape_cast %20 : vector<1x128x128xbf16> to vector<128x128xbf16>
      %c0_9 = arith.constant 0 : index
      %c0_10 = arith.constant 0 : index
      %22 = vector.load %arg11[%c0_9, %c0_10] : memref<128x128xf32, #tpu.memory_space<vmem>>, vector<128x128xf32>
      %23 = arith.truncf %14 : vector<128x128xf32> to vector<128x128xbf16>
      %cst_11 = arith.constant dense<0.000000e+00> : vector<128x128xf32>
      %24 = tpu.matmul %23, %21, %cst_11 {dimension_numbers = #tpu.dot_dimension_numbers<[1], [0], [0], [1], [0, 0, 1, 1], [], []>} : vector<128x128xbf16>, vector<128x128xbf16>, vector<128x128xf32> -> vector<128x128xf32>
      %25 = arith.addf %22, %24 : vector<128x128xf32>
      %c0_12 = arith.constant 0 : index
      %c0_13 = arith.constant 0 : index
      %26 = vector.load %arg11[%c0_12, %c0_13] : memref<128x128xf32, #tpu.memory_space<vmem>>, vector<128x128xf32>
      tpu.vector_store %arg11[%c0_12, %c0_13], %25 {strides = array<i32>} : memref<128x128xf32, #tpu.memory_space<vmem>>, vector<128x128xf32>,
    } else {
    }
    %c3_i32 = arith.constant 3 : i32
    %8 = arith.cmpi eq, %arg1, %c3_i32 : i32
    %9 = arith.extui %8 : i1 to i32
    %c0_i32_2 = arith.constant 0 : i32
    %10 = arith.cmpi ne, %9, %c0_i32_2 : i32
    scf.if %10 {
      %c0 = arith.constant 0 : index
      %c0_3 = arith.constant 0 : index
      %11 = vector.load %arg6[%c0, %c0_3] : memref<128x128xbf16, #tpu.memory_space<vmem>>, vector<128x128xbf16>
      %c0_4 = arith.constant 0 : index
      %c0_5 = arith.constant 0 : index
      %12 = vector.load %arg8[%c0_4, %c0_5] : memref<128x128xbf16, #tpu.memory_space<vmem>>, vector<128x128xbf16>
      %cst = arith.constant dense<0.000000e+00> : vector<128x128xf32>
      %13 = tpu.matmul %11, %12, %cst {dimension_numbers = #tpu.dot_dimension_numbers<[1], [0], [0], [1], [0, 0, 1, 1], [], []>} : vector<128x128xbf16>, vector<128x128xbf16>, vector<128x128xf32> -> vector<128x128xf32>
      %c0_6 = arith.constant 0 : index
      %c0_7 = arith.constant 0 : index
      %14 = vector.load %arg11[%c0_6, %c0_7] : memref<128x128xf32, #tpu.memory_space<vmem>>, vector<128x128xf32>
      %15 = arith.addf %14, %13 : vector<128x128xf32>
      %cst_8 = arith.constant 0.000000e+00 : f32
      %16 = vector.broadcast %cst_8 : f32 to vector<128x128xf32>
      %17 = arith.maximumf %15, %16 : vector<128x128xf32>
      %18 = arith.truncf %17 : vector<128x128xf32> to vector<128x128xbf16>
      %c0_9 = arith.constant 0 : index
      %c0_10 = arith.constant 0 : index
      %19 = vector.load %arg10[%c0_9, %c0_10] : memref<128x128xbf16, #tpu.memory_space<vmem>>, vector<128x128xbf16>
      tpu.vector_store %arg10[%c0_9, %c0_10], %18 {strides = array<i32>} : memref<128x128xbf16, #tpu.memory_space<vmem>>, vector<128x128xbf16>,
    } else {
    }
    return
  }
  func.func @transform_0(%arg0: i32, %arg1: i32, %arg2: memref<4xi32, #tpu.memory_space<smem>>, %arg3: memref<4xi32, #tpu.memory_space<smem>>, %arg4: memref<1xi32, #tpu.memory_space<smem>>) -> (i32, i32) {
    %c4_i32 = arith.constant 4 : i32
    %0 = arith.muli %arg0, %c4_i32 : i32
    %1 = arith.addi %0, %arg1 : i32
    %2 = arith.index_cast %1 : i32 to index
    %3 = memref.load %arg3[%2] : memref<4xi32, #tpu.memory_space<smem>>
    %c0_i32 = arith.constant 0 : i32
    %c0_i32_0 = arith.constant 0 : i32
    return %3, %c0_i32 : i32, i32
  }
  func.func @transform_1(%arg0: i32, %arg1: i32, %arg2: memref<4xi32, #tpu.memory_space<smem>>, %arg3: memref<4xi32, #tpu.memory_space<smem>>, %arg4: memref<1xi32, #tpu.memory_space<smem>>) -> (i32, i32) {
    %c0_i32 = arith.constant 0 : i32
    %c0_i32_0 = arith.constant 0 : i32
    return %arg0, %c0_i32 : i32, i32
  }
  func.func @transform_2(%arg0: i32, %arg1: i32, %arg2: memref<4xi32, #tpu.memory_space<smem>>, %arg3: memref<4xi32, #tpu.memory_space<smem>>, %arg4: memref<1xi32, #tpu.memory_space<smem>>) -> (i32, i32, i32) {
    %c0_i32 = arith.constant 0 : i32
    %c0_i32_0 = arith.constant 0 : i32
    %c0_i32_1 = arith.constant 0 : i32
    %c0_i32_2 = arith.constant 0 : i32
    return %c0_i32, %c0_i32_0, %c0_i32_1 : i32, i32, i32
  }
  func.func @transform_3(%arg0: i32, %arg1: i32, %arg2: memref<4xi32, #tpu.memory_space<smem>>, %arg3: memref<4xi32, #tpu.memory_space<smem>>, %arg4: memref<1xi32, #tpu.memory_space<smem>>) -> (i32, i32) {
    %c0_i32 = arith.constant 0 : i32
    %c0_i32_0 = arith.constant 0 : i32
    %c0_i32_1 = arith.constant 0 : i32
    return %c0_i32, %c0_i32_0 : i32, i32
  }
  func.func @transform_4(%arg0: i32, %arg1: i32, %arg2: memref<4xi32, #tpu.memory_space<smem>>, %arg3: memref<4xi32, #tpu.memory_space<smem>>, %arg4: memref<1xi32, #tpu.memory_space<smem>>) -> (i32, i32, i32) {
    %c4_i32 = arith.constant 4 : i32
    %0 = arith.muli %arg0, %c4_i32 : i32
    %1 = arith.addi %0, %arg1 : i32
    %2 = arith.index_cast %1 : i32 to index
    %3 = memref.load %arg2[%2] : memref<4xi32, #tpu.memory_space<smem>>
    %c4_i32_0 = arith.constant 4 : i32
    %4 = arith.muli %arg0, %c4_i32_0 : i32
    %5 = arith.addi %4, %arg1 : i32
    %6 = arith.index_cast %5 : i32 to index
    %7 = memref.load %arg3[%6] : memref<4xi32, #tpu.memory_space<smem>>
    %c0_i32 = arith.constant 0 : i32
    return %3, %arg0, %7 : i32, i32, i32
  }
  func.func @transform_5(%arg0: i32, %arg1: i32, %arg2: memref<4xi32, #tpu.memory_space<smem>>, %arg3: memref<4xi32, #tpu.memory_space<smem>>, %arg4: memref<1xi32, #tpu.memory_space<smem>>) -> (i32, i32) {
    %c0_i32 = arith.constant 0 : i32
    %c0_i32_0 = arith.constant 0 : i32
    return %arg0, %c0_i32 : i32, i32
  }
}

</mosaic_0001>

<llo_original>
// kernel: tpu_custom_call.1
$region0: #{tpu_custom_call.1}
  #allocation0 [shape = 'u32[]', space=smem, size = 0x4, offset = 0x4, fixed_abs, tag = 'smem constant byte address 0x4 - core index']
  #allocation1 [shape = 'u32[72,128]{1,0:T(1,128)}', space=vmem, size = 0x9000, scoped, tag = 'internal scratch']
  #allocation2 [shape = 'f32[128,128]{1,0:T(8,128)}', space=vmem, size = 0x10000, scoped, tag = 'scratch operand']
  #allocation3 [shape = 's32[1]{0}', space=sflag, size = 0x4, scoped, tag = 'scoped memory for tpu_custom_call.1']
  #allocation4 [shape = 'u8[512]{0}', space=smem, size = 0x200, scoped, tag = 'prefetched SMEM operand 0']
  #allocation5 [shape = 'u8[512]{0}', space=smem, size = 0x200, scoped, tag = 'prefetched SMEM operand 1']
  #allocation6 [shape = 's32[1]{0:T(128)S(6)}', space=smem, size = 0x200, scoped, tag = 'prefetched SMEM operand 2']
  %s0 = inlined_call_operand.vmem [shape: s32[4], index: 0, kind: input, shape index: {}]
  %s1 = inlined_call_operand.vmem [shape: s32[4], index: 1, kind: input, shape index: {}]
  %s2 = inlined_call_operand.<no memory space> [shape: s32[1], index: 2, kind: input, shape index: {}]
  %s3 = inlined_call_operand.hbm [shape: bf16[128,128], index: 3, kind: input, shape index: {}]
  %s4 = inlined_call_operand.hbm [shape: bf16[128,128], index: 4, kind: input, shape index: {}]
  %s5 = inlined_call_operand.hbm [shape: bf16[4,128,128], index: 5, kind: input, shape index: {}]
  %s6 = inlined_call_operand.hbm [shape: bf16[128,128], index: 6, kind: input, shape index: {}]
  %s7 = inlined_call_operand.hbm [shape: bf16[4,128,128], index: 7, kind: input, shape index: {}]
  %s8 = inlined_call_operand.hbm [shape: bf16[128,128], index: 8, kind: output, shape index: {}]
  %s9 = sld [smem:[#allocation0]]
  $region85: #{tpu_custom_call.1} parent=0
    _
  %s11 = ssub.s32 1, %s9
  %s12 = scalar_select 0, %s11, %s9
  %s14 = sshll.u32 %s0, 4
  %s15 = int_to_ptr.vmem [resolvable:$true] %s14
  %17 = dma.vmem_to_smem %s15, 16, [#allocation4], [#allocation3]
  %s19 = sshll.u32 %s1, 4
  %s20 = int_to_ptr.vmem [resolvable:$true] %s19
  %22 = dma.vmem_to_smem %s20, 16, [#allocation5], [#allocation3]
  %23 = sst [smem:[#allocation6]] %s2
  %25 = dma.done [#allocation3], 32
  %26 = sfence
  $region1: #{tpu_custom_call.1} parent=0
    #allocation7 [shape = 'u8[65536]{0}', space=vmem, size = 0x10000, scoped, tag = 'input window, operand 3']
    #allocation8 [shape = 's32[2]{0}', space=sflag, size = 0x8, scoped, tag = 'scoped memory for tpu_custom_call.1']
    #allocation9 [shape = 's32[2]{0}', space=sflag, size = 0x8, scoped, tag = 'scoped memory for tpu_custom_call.1']
    #allocation10 [shape = 'u8[32768]{0}', space=vmem, size = 0x8000, scoped, tag = 'input window, operand 4, single buffered']
    #allocation11 [shape = 's32[1]{0}', space=sflag, size = 0x4, scoped, tag = 'scoped memory for tpu_custom_call.1']
    #allocation12 [shape = 'u8[131072]{0}', space=vmem, size = 0x20000, scoped, tag = 'input window, operand 5, single buffered']
    #allocation13 [shape = 'u8[32768]{0}', space=vmem, size = 0x8000, scoped, tag = 'input window, operand 6, single buffered']
    #allocation14 [shape = 's32[1]{0}', space=sflag, size = 0x4, scoped, tag = 'scoped memory for tpu_custom_call.1']
    #allocation15 [shape = 'u8[65536]{0}', space=vmem, size = 0x10000, scoped, tag = 'input window, operand 7']
    #allocation16 [shape = 'u8[32768]{0}', space=vmem, size = 0x8000, scoped, tag = 'output window, operand 0, single buffered']
    %27 = vsyncpa [#allocation8], 0
    %s28 = scalar_lea.sflag [#allocation8], 1
    %29 = vsyncpa %s28, 0
    %30 = vsyncpa [#allocation11], 0
    %31 = vsyncpa [#allocation14], 0
    %32 = vsyncpa [#allocation9], 0
    loop: start=0, step=1, limit=6
    $region2: #{tpu_custom_call.1} parent=1 // loop_pre_header
      _
    $region3: #{tpu_custom_call.1} parent=1 // loop_header
      %s34 = sphi 0, %s38
      %p35 = scmp.ge.s32.totalorder %s34, 6
      %s41 = sphi 0, %s53
      %s42 = sphi 0, %s49
      %s43 = sphi 0, %s41
      %s44 = sphi 0, %s42
      %s45 = sphi 0, %s43
      %s46 = sphi 0, %s44
      %s62 = sphi 0, %s64
      %s65 = sphi 0, %s62
      %s66 = sphi 0, %s65
      %s82 = sphi 0, %s66
      %s88 = sphi 0, %s90
      %s91 = sphi 0, %s88
      %s92 = sphi 0, %s91
      %s108 = sphi 0, %s92
      %s112 = sphi 0, %s112
      %s114 = sphi 0, %s112
      %s115 = sphi 0, %s114
      %s129 = sphi 0, %s115
      %s133 = sphi 0, %s133
      %s135 = sphi 0, %s133
      %s136 = sphi 0, %s135
      %s150 = sphi 0, %s136
      %s168 = sphi 0, %s170
      %s171 = sphi 0, %s168
      %s172 = sphi 0, %s171
      %s188 = sphi 0, %s172
      %s194 = sphi 0, %s196
      %s197 = sphi 0, %s194
      %s198 = sphi 0, %s197
      %s214 = sphi 0, %s198
    $region4: #{tpu_custom_call.1} parent=1 // loop_header_branch
      %37 = sbr.rel (%p35) target = $region8
    $region5: #{tpu_custom_call.1} parent=1 // loop_body
      %s39 = ssub.s32 %s34, 1
      %s40 = ssub.s32 %s34, 2
      %s47 = sadd.s32 1, %s42
      %p48 = scmp.ge.s32.totalorder %s47, 4
      %s49 = scalar_select %p48, 0, %s47
      %s50 = sadd.s32 1, %s41
      %s51 = scalar_select %p48, %s50, %s41
      %p52 = scmp.ge.s32.totalorder %s51, 1
      %s53 = scalar_select %p52, 0, %s51
      %s54 = smul.u32 %s41, 4
      %s55 = sadd.s32 %s54, %s42
      %s56 = sld [smem:[#allocation5 + %s55]]
      %s57 = smul.u32 %s53, 4
      %s58 = sadd.s32 %s57, %s49
      %s59 = sld [smem:[#allocation5 + %s58]]
      %s60 = ssub.s32 %s56, %s59
      %p61 = scmp.eq.s32.totalorder %s60, 0
      %s63 = sadd.s32 %s62, 1
      %s64 = scalar_select %p61, %s62, %s63
      %p67 = pneg %p61
      %p68 = scmp.eq.s32.totalorder %s34, 3
      %p69 = por %p67, %p68
      %p70 = scmp.ne.s32.totalorder %s62, %s65
      %p71 = scmp.eq.s32.totalorder %s34, 0
      %p72 = por %p70, %p71
      %p73 = scmp.ne.s32.totalorder %s62, %s65
      %p74 = scmp.eq.s32.totalorder %s39, 3
      %p75 = por %p73, %p74
      %p76 = scmp.ne.s32.totalorder %s65, %s66
      %p77 = scmp.eq.s32.totalorder %s39, 0
      %p78 = por %p76, %p77
      %p79 = scmp.ne.s32.totalorder %s65, %s66
      %p80 = scmp.eq.s32.totalorder %s40, 3
      %p81 = por %p79, %p80
      %p83 = scmp.ne.s32.totalorder %s66, %s82
      %p84 = scmp.eq.s32.totalorder %s40, 0
      %p85 = por %p83, %p84
      %s86 = ssub.s32 %s41, %s53
      %p87 = scmp.eq.s32.totalorder %s86, 0
      %s89 = sadd.s32 %s88, 1
      %s90 = scalar_select %p87, %s88, %s89
      %p93 = pneg %p87
      %p94 = scmp.eq.s32.totalorder %s34, 3
      %p95 = por %p93, %p94
      %p96 = scmp.ne.s32.totalorder %s88, %s91
      %p97 = scmp.eq.s32.totalorder %s34, 0
      %p98 = por %p96, %p97
      %p99 = scmp.ne.s32.totalorder %s88, %s91
      %p100 = scmp.eq.s32.totalorder %s39, 3
      %p101 = por %p99, %p100
      %p102 = scmp.ne.s32.totalorder %s91, %s92
      %p103 = scmp.eq.s32.totalorder %s39, 0
      %p104 = por %p102, %p103
      %p105 = scmp.ne.s32.totalorder %s91, %s92
      %p106 = scmp.eq.s32.totalorder %s40, 3
      %p107 = por %p105, %p106
      %p109 = scmp.ne.s32.totalorder %s92, %s108
      %p110 = scmp.eq.s32.totalorder %s40, 0
      %p111 = por %p109, %p110
      %s113 = sadd.s32 %s112, 1
      %p116 = scmp.eq.s32.totalorder %s34, 3
      %p117 = scmp.ne.s32.totalorder %s112, %s114
      %p118 = scmp.eq.s32.totalorder %s34, 0
      %p119 = por %p117, %p118
      %p120 = scmp.ne.s32.totalorder %s112, %s114
      %p121 = scmp.eq.s32.totalorder %s39, 3
      %p122 = por %p120, %p121
      %p123 = scmp.ne.s32.totalorder %s114, %s115
      %p124 = scmp.eq.s32.totalorder %s39, 0
      %p125 = por %p123, %p124
      %p126 = scmp.ne.s32.totalorder %s114, %s115
      %p127 = scmp.eq.s32.totalorder %s40, 3
      %p128 = por %p126, %p127
      %p130 = scmp.ne.s32.totalorder %s115, %s129
      %p131 = scmp.eq.s32.totalorder %s40, 0
      %p132 = por %p130, %p131
      %s134 = sadd.s32 %s133, 1
      %p137 = scmp.eq.s32.totalorder %s34, 3
      %p138 = scmp.ne.s32.totalorder %s133, %s135
      %p139 = scmp.eq.s32.totalorder %s34, 0
      %p140 = por %p138, %p139
      %p141 = scmp.ne.s32.totalorder %s133, %s135
      %p142 = scmp.eq.s32.totalorder %s39, 3
      %p143 = por %p141, %p142
      %p144 = scmp.ne.s32.totalorder %s135, %s136
      %p145 = scmp.eq.s32.totalorder %s39, 0
      %p146 = por %p144, %p145
      %p147 = scmp.ne.s32.totalorder %s135, %s136
      %p148 = scmp.eq.s32.totalorder %s40, 3
      %p149 = por %p147, %p148
      %p151 = scmp.ne.s32.totalorder %s136, %s150
      %p152 = scmp.eq.s32.totalorder %s40, 0
      %p153 = por %p151, %p152
      %s154 = smul.u32 %s41, 4
      %s155 = sadd.s32 %s154, %s42
      %s156 = sld [smem:[#allocation4 + %s155]]
      %s157 = sld [smem:[#allocation5 + %s155]]
      %s158 = smul.u32 %s53, 4
      %s159 = sadd.s32 %s158, %s49
      %s160 = sld [smem:[#allocation4 + %s159]]
      %s161 = sld [smem:[#allocation5 + %s159]]
      %s162 = ssub.s32 %s156, %s160
      %s163 = ssub.s32 %s41, %s53
      %s164 = sor.u32 %s162, %s163
      %s165 = ssub.s32 %s157, %s161
      %s166 = sor.u32 %s164, %s165
      %p167 = scmp.eq.s32.totalorder %s166, 0
      %s169 = sadd.s32 %s168, 1
      %s170 = scalar_select %p167, %s168, %s169
      %p173 = pneg %p167
      %p174 = scmp.eq.s32.totalorder %s34, 3
      %p175 = por %p173, %p174
      %p176 = scmp.ne.s32.totalorder %s168, %s171
      %p177 = scmp.eq.s32.totalorder %s34, 0
      %p178 = por %p176, %p177
      %p179 = scmp.ne.s32.totalorder %s168, %s171
      %p180 = scmp.eq.s32.totalorder %s39, 3
      %p181 = por %p179, %p180
      %p182 = scmp.ne.s32.totalorder %s171, %s172
      %p183 = scmp.eq.s32.totalorder %s39, 0
      %p184 = por %p182, %p183
      %p185 = scmp.ne.s32.totalorder %s171, %s172
      %p186 = scmp.eq.s32.totalorder %s40, 3
      %p187 = por %p185, %p186
      %p189 = scmp.ne.s32.totalorder %s172, %s188
      %p190 = scmp.eq.s32.totalorder %s40, 0
      %p191 = por %p189, %p190
      %s192 = ssub.s32 %s41, %s53
      %p193 = scmp.eq.s32.totalorder %s192, 0
      %s195 = sadd.s32 %s194, 1
      %s196 = scalar_select %p193, %s194, %s195
      %p199 = pneg %p193
      %p200 = scmp.eq.s32.totalorder %s34, 3
      %p201 = por %p199, %p200
      %p202 = scmp.ne.s32.totalorder %s194, %s197
      %p203 = scmp.eq.s32.totalorder %s34, 0
      %p204 = por %p202, %p203
      %p205 = scmp.ne.s32.totalorder %s194, %s197
      %p206 = scmp.eq.s32.totalorder %s39, 3
      %p207 = por %p205, %p206
      %p208 = scmp.ne.s32.totalorder %s197, %s198
      %p209 = scmp.eq.s32.totalorder %s39, 0
      %p210 = por %p208, %p209
      %p211 = scmp.ne.s32.totalorder %s197, %s198
      %p212 = scmp.eq.s32.totalorder %s40, 3
      %p213 = por %p211, %p212
      %p215 = scmp.ne.s32.totalorder %s198, %s214
      %p216 = scmp.eq.s32.totalorder %s40, 0
      %p217 = por %p215, %p216
      %p218 = scmp.le.s32.totalorder 1, %s34
      %p219 = scmp.lt.s32.totalorder %s34, 5
      %p220 = pnand %p218, %p219
      %p221 = pneg %p220
      // Predicated region
      $region9: #{tpu_custom_call.1} parent=5 // pred_check
        _
      $region10: #{tpu_custom_call.1} parent=5 // pred_check_branch
        %223 = sbr.rel (%p220) target = $region12
      $region11: #{tpu_custom_call.1} parent=5 // pred_region
        %s224 = ssub.s32 %s34, 1
        // Predicated region
        $region13: #{tpu_custom_call.1} parent=11 // pred_check
          %p225 = pneg %p104
        $region14: #{tpu_custom_call.1} parent=11 // pred_check_branch
          %227 = sbr.rel (%p225) target = $region16
        $region15: #{tpu_custom_call.1} parent=11 // pred_region
          %s228 = smul.u32 16, %s43
          %230 = vsyncadd [#allocation11], 0
          %s231 = smul.addr %s228, 4
          %s232 = scalar_lea.hbm %s4, %s231
          %s233 = sshll.u32 %s232, 4
          %s234 = int_to_ptr.hbm [resolvable:$true] %s233
          %s235 = sshll.u32 [#allocation10], 4
          %s236 = int_to_ptr.vmem [resolvable:$true] %s235
          %241 = dma.hbm_to_vmem [thread:$0]  %s234, 1024, %s236, [#allocation11], 64, 64, 4
        $region16: #{tpu_custom_call.1} parent=11 // pred_fallthru
          _
        // Predicated region
        $region17: #{tpu_custom_call.1} parent=11 // pred_check
          %p242 = pneg %p125
        $region18: #{tpu_custom_call.1} parent=11 // pred_check_branch
          %244 = sbr.rel (%p242) target = $region20
        $region19: #{tpu_custom_call.1} parent=11 // pred_region
          %246 = vsyncadd [#allocation11], 0
          %s247 = sshll.u32 %s5, 4
          %s248 = int_to_ptr.hbm [resolvable:$true] %s247
          %s249 = sshll.u32 [#allocation12], 4
          %s250 = int_to_ptr.vmem [resolvable:$true] %s249
          %255 = dma.hbm_to_vmem [thread:$0]  %s248, 4096, %s250, [#allocation11], 64, 64, 4
        $region20: #{tpu_custom_call.1} parent=11 // pred_fallthru
          _
        // Predicated region
        $region21: #{tpu_custom_call.1} parent=11 // pred_check
          %p256 = pneg %p146
        $region22: #{tpu_custom_call.1} parent=11 // pred_check_branch
          %258 = sbr.rel (%p256) target = $region24
        $region23: #{tpu_custom_call.1} parent=11 // pred_region
          %260 = vsyncadd [#allocation14], 0
          %s261 = sshll.u32 %s6, 4
          %s262 = int_to_ptr.hbm [resolvable:$true] %s261
          %s263 = sshll.u32 [#allocation13], 4
          %s264 = int_to_ptr.vmem [resolvable:$true] %s263
          %269 = dma.hbm_to_vmem [thread:$0]  %s262, 1024, %s264, [#allocation14], 64, 64, 4
        $region24: #{tpu_custom_call.1} parent=11 // pred_fallthru
          _
      $region12: #{tpu_custom_call.1} parent=5 // pred_fallthru
        _
      %p270 = scmp.lt.s32.totalorder %s34, 4
      // Predicated region
      $region25: #{tpu_custom_call.1} parent=5 // pred_check
        %p271 = pneg %p270
      $region26: #{tpu_custom_call.1} parent=5 // pred_check_branch
        %273 = sbr.rel (%p271) target = $region28
      $region27: #{tpu_custom_call.1} parent=5 // pred_region
        // Predicated region
        $region29: #{tpu_custom_call.1} parent=27 // pred_check
          %p274 = pneg %p72
        $region30: #{tpu_custom_call.1} parent=27 // pred_check_branch
          %276 = sbr.rel (%p274) target = $region32
        $region31: #{tpu_custom_call.1} parent=27 // pred_region
          %s277 = sand.u32 %s34, 1
          %s278 = scalar_lea.sflag [#allocation8], %s277
          %s279 = sand.u32 %s62, 1
          %s280 = smul.addr %s279, 64
          %s281 = scalar_lea.vmem [#allocation7], %s280
          %s282 = smul.u32 %s41, 4
          %s283 = sadd.s32 %s282, %s42
          %s284 = sld [smem:[#allocation5 + %s283]]
          %s285 = smul.u32 16, %s284
          %287 = vsyncadd %s278, 0
          %s288 = smul.addr %s285, 4
          %s289 = scalar_lea.hbm %s3, %s288
          %s290 = sshll.u32 %s289, 4
          %s291 = int_to_ptr.hbm [resolvable:$true] %s290
          %s292 = sshll.u32 %s281, 4
          %s293 = int_to_ptr.vmem [resolvable:$true] %s292
          %298 = dma.hbm_to_vmem [thread:$0]  %s291, 1024, %s293, %s278, 64, 64, 4
        $region32: #{tpu_custom_call.1} parent=27 // pred_fallthru
          _
        // Predicated region
        $region33: #{tpu_custom_call.1} parent=27 // pred_check
          %p299 = pneg %p178
        $region34: #{tpu_custom_call.1} parent=27 // pred_check_branch
          %301 = sbr.rel (%p299) target = $region36
        $region35: #{tpu_custom_call.1} parent=27 // pred_region
          %s302 = sand.u32 %s34, 1
          %s303 = scalar_lea.sflag [#allocation8], %s302
          %s304 = sand.u32 %s168, 1
          %s305 = smul.addr %s304, 64
          %s306 = scalar_lea.vmem [#allocation15], %s305
          %s307 = smul.u32 %s41, 4
          %s308 = sadd.s32 %s307, %s42
          %s309 = sld [smem:[#allocation4 + %s308]]
          %s310 = sld [smem:[#allocation5 + %s308]]
          %s311 = smul.u32 16, %s41
          %313 = vsyncadd %s303, 0
          %s314 = sadd.s32 %s310, %s311
          %s315 = smul.addr %s309, 16
          %s316 = sadd.s32 %s314, %s315
          %s317 = smul.addr %s316, 4
          %s318 = scalar_lea.hbm %s7, %s317
          %s319 = sshll.u32 %s318, 4
          %s320 = int_to_ptr.hbm [resolvable:$true] %s319
          %s321 = sshll.u32 %s306, 4
          %s322 = int_to_ptr.vmem [resolvable:$true] %s321
          %327 = dma.hbm_to_vmem [thread:$0]  %s320, 1024, %s322, %s303, 64, 64, 4
        $region36: #{tpu_custom_call.1} parent=27 // pred_fallthru
          _
      $region28: #{tpu_custom_call.1} parent=5 // pred_fallthru
        _
      %p328 = scmp.le.s32.totalorder 1, %s34
      %p329 = scmp.lt.s32.totalorder %s34, 5
      %p330 = pnand %p328, %p329
      %p331 = pneg %p330
      // Predicated region
      $region37: #{tpu_custom_call.1} parent=5 // pred_check
        _
      $region38: #{tpu_custom_call.1} parent=5 // pred_check_branch
        %333 = sbr.rel (%p330) target = $region40
      $region39: #{tpu_custom_call.1} parent=5 // pred_region
        %s334 = ssub.s32 %s34, 1
        %s335 = sand.u32 %s39, 1
        %s336 = scalar_lea.sflag [#allocation8], %s335
        %s337 = sand.u32 %s65, 1
        %s338 = smul.addr %s337, 64
        %s339 = scalar_lea.vmem [#allocation7], %s338
        // Predicated region
        $region41: #{tpu_custom_call.1} parent=39 // pred_check
          %p340 = pneg %p78
        $region42: #{tpu_custom_call.1} parent=39 // pred_check_branch
          %342 = sbr.rel (%p340) target = $region44
        $region43: #{tpu_custom_call.1} parent=39 // pred_region
          %344 = dma.done %s336, 1024
        $region44: #{tpu_custom_call.1} parent=39 // pred_fallthru
          _
        // Predicated region
        $region45: #{tpu_custom_call.1} parent=39 // pred_check
          %p345 = pneg %p104
        $region46: #{tpu_custom_call.1} parent=39 // pred_check_branch
          %347 = sbr.rel (%p345) target = $region48
        $region47: #{tpu_custom_call.1} parent=39 // pred_region
          %349 = dma.done [#allocation11], 1024
        $region48: #{tpu_custom_call.1} parent=39 // pred_fallthru
          _
        // Predicated region
        $region49: #{tpu_custom_call.1} parent=39 // pred_check
          %p350 = pneg %p125
        $region50: #{tpu_custom_call.1} parent=39 // pred_check_branch
          %352 = sbr.rel (%p350) target = $region52
        $region51: #{tpu_custom_call.1} parent=39 // pred_region
          %354 = dma.done [#allocation11], 4096
        $region52: #{tpu_custom_call.1} parent=39 // pred_fallthru
          _
        // Predicated region
        $region53: #{tpu_custom_call.1} parent=39 // pred_check
          %p355 = pneg %p146
        $region54: #{tpu_custom_call.1} parent=39 // pred_check_branch
          %357 = sbr.rel (%p355) target = $region56
        $region55: #{tpu_custom_call.1} parent=39 // pred_region
          %359 = dma.done [#allocation14], 1024
        $region56: #{tpu_custom_call.1} parent=39 // pred_fallthru
          _
        %s360 = sand.u32 %s39, 1
        %s361 = scalar_lea.sflag [#allocation8], %s360
        %s362 = sand.u32 %s171, 1
        %s363 = smul.addr %s362, 64
        %s364 = scalar_lea.vmem [#allocation15], %s363
        // Predicated region
        $region57: #{tpu_custom_call.1} parent=39 // pred_check
          %p365 = pneg %p184
        $region58: #{tpu_custom_call.1} parent=39 // pred_check_branch
          %367 = sbr.rel (%p365) target = $region60
        $region59: #{tpu_custom_call.1} parent=39 // pred_region
          %369 = dma.done %s361, 1024
        $region60: #{tpu_custom_call.1} parent=39 // pred_fallthru
          _
        %s370 = sand.u32 %s39, 1
        %s371 = scalar_lea.sflag [#allocation8], %s370
        %s372 = sand.u32 %s65, 1
        %s373 = smul.addr %s372, 64
        %s374 = scalar_lea.vmem [#allocation7], %s373
        %p375 = pneg %p78
        %p376 = pneg %p75
        %p377 = pneg %p104
        %p378 = pneg %p101
        %p379 = pneg %p125
        %p380 = pneg %p122
        %p381 = pneg %p146
        %p382 = pneg %p143
        %s383 = sand.u32 %s39, 1
        %s384 = scalar_lea.sflag [#allocation8], %s383
        %s385 = sand.u32 %s171, 1
        %s386 = smul.addr %s385, 64
        %s387 = scalar_lea.vmem [#allocation15], %s386
        %p388 = pneg %p184
        %p389 = pneg %p181
        %p390 = pneg %p210
        %p391 = pneg %p207
        %s392 = smul.u32 %s43, 4
        %s393 = sadd.s32 %s392, %s44
        %s394 = sld [smem:[#allocation5 + %s393]]
        %s395 = smul.u32 16, %s394
        %s396 = smul.u32 16, %s43
        %s397 = smul.u32 %s43, 4
        %s398 = sadd.s32 %s397, %s44
        %s399 = sld [smem:[#allocation4 + %s398]]
        %s400 = sld [smem:[#allocation5 + %s398]]
        %s401 = smul.u32 16, %s43
        %s402 = smul.u32 16, %s43
        %p403 = scmp.eq.s32.totalorder %s44, 0
        // Predicated region
        $region61: #{tpu_custom_call.1} parent=39 // pred_check
          %p404 = pneg %p403
        $region62: #{tpu_custom_call.1} parent=39 // pred_check_branch
          %406 = sbr.rel (%p404) target = $region64
        $region63: #{tpu_custom_call.1} parent=39 // pred_region
          %407 = vst [vmem:[#allocation2] sm:$0xff] 0.0
          %408 = vst [vmem:[#allocation2 + $0x8] sm:$0xff] 0.0
          %409 = vst [vmem:[#allocation2 + $0x10] sm:$0xff] 0.0
          %410 = vst [vmem:[#allocation2 + $0x18] sm:$0xff] 0.0
          %411 = vst [vmem:[#allocation2 + $0x20] sm:$0xff] 0.0
          %412 = vst [vmem:[#allocation2 + $0x28] sm:$0xff] 0.0
          %413 = vst [vmem:[#allocation2 + $0x30] sm:$0xff] 0.0
          %414 = vst [vmem:[#allocation2 + $0x38] sm:$0xff] 0.0
          %415 = vst [vmem:[#allocation2 + $0x40] sm:$0xff] 0.0
          %416 = vst [vmem:[#allocation2 + $0x48] sm:$0xff] 0.0
          %417 = vst [vmem:[#allocation2 + $0x50] sm:$0xff] 0.0
          %418 = vst [vmem:[#allocation2 + $0x58] sm:$0xff] 0.0
          %419 = vst [vmem:[#allocation2 + $0x60] sm:$0xff] 0.0
          %420 = vst [vmem:[#allocation2 + $0x68] sm:$0xff] 0.0
          %421 = vst [vmem:[#allocation2 + $0x70] sm:$0xff] 0.0
          %422 = vst [vmem:[#allocation2 + $0x78] sm:$0xff] 0.0
        $region64: #{tpu_custom_call.1} parent=39 // pred_fallthru
          _
        %s423 = sld [smem:[#allocation6 + %s43]]
        %p424 = scmp.lt.s32.totalorder %s44, %s423
        // Predicated region
        $region65: #{tpu_custom_call.1} parent=39 // pred_check
          %p425 = pneg %p424
        $region66: #{tpu_custom_call.1} parent=39 // pred_check_branch
          %427 = sbr.rel (%p425) target = $region68
        $region67: #{tpu_custom_call.1} parent=39 // pred_region
          %v428 = vld [vmem:[%s364] sm:$0xf]
          %v429 = vld [vmem:[%s364 + $0x4] sm:$0xf]
          %v430 = vld [vmem:[%s364 + $0x8] sm:$0xf]
          %v431 = vld [vmem:[%s364 + $0xc] sm:$0xf]
          %v432 = vld [vmem:[%s364 + $0x10] sm:$0xf]
          %v433 = vld [vmem:[%s364 + $0x14] sm:$0xf]
          %v434 = vld [vmem:[%s364 + $0x18] sm:$0xf]
          %v435 = vld [vmem:[%s364 + $0x1c] sm:$0xf]
          %v436 = vld [vmem:[%s364 + $0x20] sm:$0xf]
          %v437 = vld [vmem:[%s364 + $0x24] sm:$0xf]
          %v438 = vld [vmem:[%s364 + $0x28] sm:$0xf]
          %v439 = vld [vmem:[%s364 + $0x2c] sm:$0xf]
          %v440 = vld [vmem:[%s364 + $0x30] sm:$0xf]
          %v441 = vld [vmem:[%s364 + $0x34] sm:$0xf]
          %v442 = vld [vmem:[%s364 + $0x38] sm:$0xf]
          %v443 = vld [vmem:[%s364 + $0x3c] sm:$0xf]
          %v444 = vld [vmem:[%s339] sm:$0xf]
          %v445 = vld [vmem:[%s339 + $0x4] sm:$0xf]
          %v446 = vld [vmem:[%s339 + $0x8] sm:$0xf]
          %v447 = vld [vmem:[%s339 + $0xc] sm:$0xf]
          %v448 = vld [vmem:[%s339 + $0x10] sm:$0xf]
          %v449 = vld [vmem:[%s339 + $0x14] sm:$0xf]
          %v450 = vld [vmem:[%s339 + $0x18] sm:$0xf]
          %v451 = vld [vmem:[%s339 + $0x1c] sm:$0xf]
          %v452 = vld [vmem:[%s339 + $0x20] sm:$0xf]
          %v453 = vld [vmem:[%s339 + $0x24] sm:$0xf]
          %v454 = vld [vmem:[%s339 + $0x28] sm:$0xf]
          %v455 = vld [vmem:[%s339 + $0x2c] sm:$0xf]
          %v456 = vld [vmem:[%s339 + $0x30] sm:$0xf]
          %v457 = vld [vmem:[%s339 + $0x34] sm:$0xf]
          %v458 = vld [vmem:[%s339 + $0x38] sm:$0xf]
          %v459 = vld [vmem:[%s339 + $0x3c] sm:$0xf]
          %v476 = vunpack.c.l.b16 %v428
          %v477 = vunpack.c.l.b16 %v429
          %v478 = vunpack.c.l.b16 %v430
          %v479 = vunpack.c.l.b16 %v431
          %v480 = vunpack.c.l.b16 %v432
          %v481 = vunpack.c.l.b16 %v433
          %v482 = vunpack.c.l.b16 %v434
          %v483 = vunpack.c.l.b16 %v435
          %v484 = vunpack.c.l.b16 %v436
          %v485 = vunpack.c.l.b16 %v437
          %v486 = vunpack.c.l.b16 %v438
          %v487 = vunpack.c.l.b16 %v439
          %v488 = vunpack.c.l.b16 %v440
          %v489 = vunpack.c.l.b16 %v441
          %v490 = vunpack.c.l.b16 %v442
          %v491 = vunpack.c.l.b16 %v443
          %v492 = vpack.c.b16 %v477, %v476
          %v493 = vpack.c.b16 %v479, %v478
          %v494 = vpack.c.b16 %v481, %v480
          %v495 = vpack.c.b16 %v483, %v482
          %v496 = vpack.c.b16 %v485, %v484
          %v497 = vpack.c.b16 %v487, %v486
          %v498 = vpack.c.b16 %v489, %v488
          %v499 = vpack.c.b16 %v491, %v490
          %v524 = vunpack.c.l.b16 %v444
          %v525 = vunpack.c.l.b16 %v445
          %v526 = vunpack.c.l.b16 %v446
          %v527 = vunpack.c.l.b16 %v447
          %v528 = vunpack.c.l.b16 %v448
          %v529 = vunpack.c.l.b16 %v449
          %v530 = vunpack.c.l.b16 %v450
          %v531 = vunpack.c.l.b16 %v451
          %v532 = vunpack.c.l.b16 %v452
          %v533 = vunpack.c.l.b16 %v453
          %v534 = vunpack.c.l.b16 %v454
          %v535 = vunpack.c.l.b16 %v455
          %v536 = vunpack.c.l.b16 %v456
          %v537 = vunpack.c.l.b16 %v457
          %v538 = vunpack.c.l.b16 %v458
          %v539 = vunpack.c.l.b16 %v459
          %v540 = vpack.c.b16 %v525, %v524
          %v541 = vpack.c.b16 %v527, %v526
          %v542 = vpack.c.b16 %v529, %v528
          %v543 = vpack.c.b16 %v531, %v530
          %v544 = vpack.c.b16 %v533, %v532
          %v545 = vpack.c.b16 %v535, %v534
          %v546 = vpack.c.b16 %v537, %v536
          %v547 = vpack.c.b16 %v539, %v538
          %556 = vmatpush.bf16.msra.mxu0 %v547
          %557 = vmatpush.bf16.msra.mxu0 %v546
          %558 = vmatpush.bf16.msra.mxu0 %v545
          %559 = vmatpush.bf16.msra.mxu0 %v544
          %560 = vmatpush.bf16.msra.mxu0 %v543
          %561 = vmatpush.bf16.msra.mxu0 %v542
          %562 = vmatpush.bf16.msra.mxu0 %v541
          %563 = vmatpush.bf16.msra.mxu0 %v540
          %564 = vmatmul.bf16.gmra.mxu0 %v492
          %v565 = vpop.f32.mrf.mxu0
          %v566 = vadd.f32 0.0, %v565
          %v567 = vpop.f32.mrf.mxu0
          %v568 = vadd.f32 0.0, %v567
          %569 = vmatmul.bf16.gmra.mxu0 %v493
          %v570 = vpop.f32.mrf.mxu0
          %v571 = vadd.f32 0.0, %v570
          %v572 = vpop.f32.mrf.mxu0
          %v573 = vadd.f32 0.0, %v572
          %574 = vmatmul.bf16.gmra.mxu0 %v494
          %v575 = vpop.f32.mrf.mxu0
          %v576 = vadd.f32 0.0, %v575
          %v577 = vpop.f32.mrf.mxu0
          %v578 = vadd.f32 0.0, %v577
          %579 = vmatmul.bf16.gmra.mxu0 %v495
          %v580 = vpop.f32.mrf.mxu0
          %v581 = vadd.f32 0.0, %v580
          %v582 = vpop.f32.mrf.mxu0
          %v583 = vadd.f32 0.0, %v582
          %584 = vmatmul.bf16.gmra.mxu0 %v496
          %v585 = vpop.f32.mrf.mxu0
          %v586 = vadd.f32 0.0, %v585
          %v587 = vpop.f32.mrf.mxu0
          %v588 = vadd.f32 0.0, %v587
          %589 = vmatmul.bf16.gmra.mxu0 %v497
          %v590 = vpop.f32.mrf.mxu0
          %v591 = vadd.f32 0.0, %v590
          %v592 = vpop.f32.mrf.mxu0
          %v593 = vadd.f32 0.0, %v592
          %594 = vmatmul.bf16.gmra.mxu0 %v498
          %v595 = vpop.f32.mrf.mxu0
          %v596 = vadd.f32 0.0, %v595
          %v597 = vpop.f32.mrf.mxu0
          %v598 = vadd.f32 0.0, %v597
          %599 = vmatmul.bf16.gmra.mxu0 %v499
          %v600 = vpop.f32.mrf.mxu0
          %v601 = vadd.f32 0.0, %v600
          %v602 = vpop.f32.mrf.mxu0
          %v603 = vadd.f32 0.0, %v602
          %604 = vdwg.mxu0
          %s605 = smul.u32 %s43, 4
          %s606 = sadd.s32 %s605, %s44
          %s607 = sld [smem:[#allocation4 + %s606]]
          %s608 = smul.u32 %s607, 16
          %s609 = smul.addr %s608, 4
          %s610 = scalar_lea.vmem [#allocation12], %s609
          %v611 = vld [vmem:[%s610] sm:$0xf]
          %v612 = vld [vmem:[%s610 + $0x4] sm:$0xf]
          %v613 = vld [vmem:[%s610 + $0x8] sm:$0xf]
          %v614 = vld [vmem:[%s610 + $0xc] sm:$0xf]
          %v615 = vld [vmem:[%s610 + $0x10] sm:$0xf]
          %v616 = vld [vmem:[%s610 + $0x14] sm:$0xf]
          %v617 = vld [vmem:[%s610 + $0x18] sm:$0xf]
          %v618 = vld [vmem:[%s610 + $0x1c] sm:$0xf]
          %v619 = vld [vmem:[%s610 + $0x20] sm:$0xf]
          %v620 = vld [vmem:[%s610 + $0x24] sm:$0xf]
          %v621 = vld [vmem:[%s610 + $0x28] sm:$0xf]
          %v622 = vld [vmem:[%s610 + $0x2c] sm:$0xf]
          %v623 = vld [vmem:[%s610 + $0x30] sm:$0xf]
          %v624 = vld [vmem:[%s610 + $0x34] sm:$0xf]
          %v625 = vld [vmem:[%s610 + $0x38] sm:$0xf]
          %v626 = vld [vmem:[%s610 + $0x3c] sm:$0xf]
          %v627 = vld [vmem:[#allocation2] sm:$0xff]
          %v628 = vld [vmem:[#allocation2 + $0x8] sm:$0xff]
          %v629 = vld [vmem:[#allocation2 + $0x10] sm:$0xff]
          %v630 = vld [vmem:[#allocation2 + $0x18] sm:$0xff]
          %v631 = vld [vmem:[#allocation2 + $0x20] sm:$0xff]
          %v632 = vld [vmem:[#allocation2 + $0x28] sm:$0xff]
          %v633 = vld [vmem:[#allocation2 + $0x30] sm:$0xff]
          %v634 = vld [vmem:[#allocation2 + $0x38] sm:$0xff]
          %v635 = vld [vmem:[#allocation2 + $0x40] sm:$0xff]
          %v636 = vld [vmem:[#allocation2 + $0x48] sm:$0xff]
          %v637 = vld [vmem:[#allocation2 + $0x50] sm:$0xff]
          %v638 = vld [vmem:[#allocation2 + $0x58] sm:$0xff]
          %v639 = vld [vmem:[#allocation2 + $0x60] sm:$0xff]
          %v640 = vld [vmem:[#allocation2 + $0x68] sm:$0xff]
          %v641 = vld [vmem:[#allocation2 + $0x70] sm:$0xff]
          %v642 = vld [vmem:[#allocation2 + $0x78] sm:$0xff]
          %v643 = vpack.c.bf16 %v568, %v566
          %v644 = vpack.c.bf16 %v573, %v571
          %v645 = vpack.c.bf16 %v578, %v576
          %v646 = vpack.c.bf16 %v583, %v581
          %v647 = vpack.c.bf16 %v588, %v586
          %v648 = vpack.c.bf16 %v593, %v591
          %v649 = vpack.c.bf16 %v598, %v596
          %v650 = vpack.c.bf16 %v603, %v601
          %v667 = vunpack.c.l.b16 %v611
          %v668 = vunpack.c.l.b16 %v612
          %v669 = vunpack.c.l.b16 %v613
          %v670 = vunpack.c.l.b16 %v614
          %v671 = vunpack.c.l.b16 %v615
          %v672 = vunpack.c.l.b16 %v616
          %v673 = vunpack.c.l.b16 %v617
          %v674 = vunpack.c.l.b16 %v618
          %v675 = vunpack.c.l.b16 %v619
          %v676 = vunpack.c.l.b16 %v620
          %v677 = vunpack.c.l.b16 %v621
          %v678 = vunpack.c.l.b16 %v622
          %v679 = vunpack.c.l.b16 %v623
          %v680 = vunpack.c.l.b16 %v624
          %v681 = vunpack.c.l.b16 %v625
          %v682 = vunpack.c.l.b16 %v626
          %v683 = vpack.c.b16 %v668, %v667
          %v684 = vpack.c.b16 %v670, %v669
          %v685 = vpack.c.b16 %v672, %v671
          %v686 = vpack.c.b16 %v674, %v673
          %v687 = vpack.c.b16 %v676, %v675
          %v688 = vpack.c.b16 %v678, %v677
          %v689 = vpack.c.b16 %v680, %v679
          %v690 = vpack.c.b16 %v682, %v681
          %699 = vmatpush.bf16.msra.mxu0 %v690
          %700 = vmatpush.bf16.msra.mxu0 %v689
          %701 = vmatpush.bf16.msra.mxu0 %v688
          %702 = vmatpush.bf16.msra.mxu0 %v687
          %703 = vmatpush.bf16.msra.mxu0 %v686
          %704 = vmatpush.bf16.msra.mxu0 %v685
          %705 = vmatpush.bf16.msra.mxu0 %v684
          %706 = vmatpush.bf16.msra.mxu0 %v683
          %707 = vmatmul.bf16.gmra.mxu0 %v643
          %v708 = vpop.f32.mrf.mxu0
          %v709 = vadd.f32 0.0, %v708
          %v710 = vpop.f32.mrf.mxu0
          %v711 = vadd.f32 0.0, %v710
          %712 = vmatmul.bf16.gmra.mxu0 %v644
          %v713 = vpop.f32.mrf.mxu0
          %v714 = vadd.f32 0.0, %v713
          %v715 = vpop.f32.mrf.mxu0
          %v716 = vadd.f32 0.0, %v715
          %717 = vmatmul.bf16.gmra.mxu0 %v645
          %v718 = vpop.f32.mrf.mxu0
          %v719 = vadd.f32 0.0, %v718
          %v720 = vpop.f32.mrf.mxu0
          %v721 = vadd.f32 0.0, %v720
          %722 = vmatmul.bf16.gmra.mxu0 %v646
          %v723 = vpop.f32.mrf.mxu0
          %v724 = vadd.f32 0.0, %v723
          %v725 = vpop.f32.mrf.mxu0
          %v726 = vadd.f32 0.0, %v725
          %727 = vmatmul.bf16.gmra.mxu0 %v647
          %v728 = vpop.f32.mrf.mxu0
          %v729 = vadd.f32 0.0, %v728
          %v730 = vpop.f32.mrf.mxu0
          %v731 = vadd.f32 0.0, %v730
          %732 = vmatmul.bf16.gmra.mxu0 %v648
          %v733 = vpop.f32.mrf.mxu0
          %v734 = vadd.f32 0.0, %v733
          %v735 = vpop.f32.mrf.mxu0
          %v736 = vadd.f32 0.0, %v735
          %737 = vmatmul.bf16.gmra.mxu0 %v649
          %v738 = vpop.f32.mrf.mxu0
          %v739 = vadd.f32 0.0, %v738
          %v740 = vpop.f32.mrf.mxu0
          %v741 = vadd.f32 0.0, %v740
          %742 = vmatmul.bf16.gmra.mxu0 %v650
          %v743 = vpop.f32.mrf.mxu0
          %v744 = vadd.f32 0.0, %v743
          %v745 = vpop.f32.mrf.mxu0
          %v746 = vadd.f32 0.0, %v745
          %747 = vdwg.mxu0
          %v748 = vadd.f32 %v627, %v709
          %v749 = vadd.f32 %v628, %v711
          %v750 = vadd.f32 %v629, %v714
          %v751 = vadd.f32 %v630, %v716
          %v752 = vadd.f32 %v631, %v719
          %v753 = vadd.f32 %v632, %v721
          %v754 = vadd.f32 %v633, %v724
          %v755 = vadd.f32 %v634, %v726
          %v756 = vadd.f32 %v635, %v729
          %v757 = vadd.f32 %v636, %v731
          %v758 = vadd.f32 %v637, %v734
          %v759 = vadd.f32 %v638, %v736
          %v760 = vadd.f32 %v639, %v739
          %v761 = vadd.f32 %v640, %v741
          %v762 = vadd.f32 %v641, %v744
          %v763 = vadd.f32 %v642, %v746
          %764 = vst [vmem:[#allocation2] sm:$0xff] %v748
          %765 = vst [vmem:[#allocation2 + $0x8] sm:$0xff] %v749
          %766 = vst [vmem:[#allocation2 + $0x10] sm:$0xff] %v750
          %767 = vst [vmem:[#allocation2 + $0x18] sm:$0xff] %v751
          %768 = vst [vmem:[#allocation2 + $0x20] sm:$0xff] %v752
          %769 = vst [vmem:[#allocation2 + $0x28] sm:$0xff] %v753
          %770 = vst [vmem:[#allocation2 + $0x30] sm:$0xff] %v754
          %771 = vst [vmem:[#allocation2 + $0x38] sm:$0xff] %v755
          %772 = vst [vmem:[#allocation2 + $0x40] sm:$0xff] %v756
          %773 = vst [vmem:[#allocation2 + $0x48] sm:$0xff] %v757
          %774 = vst [vmem:[#allocation2 + $0x50] sm:$0xff] %v758
          %775 = vst [vmem:[#allocation2 + $0x58] sm:$0xff] %v759
          %776 = vst [vmem:[#allocation2 + $0x60] sm:$0xff] %v760
          %777 = vst [vmem:[#allocation2 + $0x68] sm:$0xff] %v761
          %778 = vst [vmem:[#allocation2 + $0x70] sm:$0xff] %v762
          %779 = vst [vmem:[#allocation2 + $0x78] sm:$0xff] %v763
        $region68: #{tpu_custom_call.1} parent=39 // pred_fallthru
          _
        %p780 = scmp.eq.s32.totalorder %s44, 3
        // Predicated region
        $region69: #{tpu_custom_call.1} parent=39 // pred_check
          %p781 = pneg %p780
        $region70: #{tpu_custom_call.1} parent=39 // pred_check_branch
          %783 = sbr.rel (%p781) target = $region72
        $region71: #{tpu_custom_call.1} parent=39 // pred_region
          %v784 = vld [vmem:[#allocation10] sm:$0xf]
          %v785 = vld [vmem:[#allocation10 + $0x4] sm:$0xf]
          %v786 = vld [vmem:[#allocation10 + $0x8] sm:$0xf]
          %v787 = vld [vmem:[#allocation10 + $0xc] sm:$0xf]
          %v788 = vld [vmem:[#allocation10 + $0x10] sm:$0xf]
          %v789 = vld [vmem:[#allocation10 + $0x14] sm:$0xf]
          %v790 = vld [vmem:[#allocation10 + $0x18] sm:$0xf]
          %v791 = vld [vmem:[#allocation10 + $0x1c] sm:$0xf]
          %v792 = vld [vmem:[#allocation10 + $0x20] sm:$0xf]
          %v793 = vld [vmem:[#allocation10 + $0x24] sm:$0xf]
          %v794 = vld [vmem:[#allocation10 + $0x28] sm:$0xf]
          %v795 = vld [vmem:[#allocation10 + $0x2c] sm:$0xf]
          %v796 = vld [vmem:[#allocation10 + $0x30] sm:$0xf]
          %v797 = vld [vmem:[#allocation10 + $0x34] sm:$0xf]
          %v798 = vld [vmem:[#allocation10 + $0x38] sm:$0xf]
          %v799 = vld [vmem:[#allocation10 + $0x3c] sm:$0xf]
          %v800 = vld [vmem:[#allocation13] sm:$0xf]
          %v801 = vld [vmem:[#allocation13 + $0x4] sm:$0xf]
          %v802 = vld [vmem:[#allocation13 + $0x8] sm:$0xf]
          %v803 = vld [vmem:[#allocation13 + $0xc] sm:$0xf]
          %v804 = vld [vmem:[#allocation13 + $0x10] sm:$0xf]
          %v805 = vld [vmem:[#allocation13 + $0x14] sm:$0xf]
          %v806 = vld [vmem:[#allocation13 + $0x18] sm:$0xf]
          %v807 = vld [vmem:[#allocation13 + $0x1c] sm:$0xf]
          %v808 = vld [vmem:[#allocation13 + $0x20] sm:$0xf]
          %v809 = vld [vmem:[#allocation13 + $0x24] sm:$0xf]
          %v810 = vld [vmem:[#allocation13 + $0x28] sm:$0xf]
          %v811 = vld [vmem:[#allocation13 + $0x2c] sm:$0xf]
          %v812 = vld [vmem:[#allocation13 + $0x30] sm:$0xf]
          %v813 = vld [vmem:[#allocation13 + $0x34] sm:$0xf]
          %v814 = vld [vmem:[#allocation13 + $0x38] sm:$0xf]
          %v815 = vld [vmem:[#allocation13 + $0x3c] sm:$0xf]
          %v832 = vunpack.c.l.b16 %v784
          %v833 = vunpack.c.l.b16 %v785
          %v834 = vunpack.c.l.b16 %v786
          %v835 = vunpack.c.l.b16 %v787
          %v836 = vunpack.c.l.b16 %v788
          %v837 = vunpack.c.l.b16 %v789
          %v838 = vunpack.c.l.b16 %v790
          %v839 = vunpack.c.l.b16 %v791
          %v840 = vunpack.c.l.b16 %v792
          %v841 = vunpack.c.l.b16 %v793
          %v842 = vunpack.c.l.b16 %v794
          %v843 = vunpack.c.l.b16 %v795
          %v844 = vunpack.c.l.b16 %v796
          %v845 = vunpack.c.l.b16 %v797
          %v846 = vunpack.c.l.b16 %v798
          %v847 = vunpack.c.l.b16 %v799
          %v848 = vpack.c.b16 %v833, %v832
          %v849 = vpack.c.b16 %v835, %v834
          %v850 = vpack.c.b16 %v837, %v836
          %v851 = vpack.c.b16 %v839, %v838
          %v852 = vpack.c.b16 %v841, %v840
          %v853 = vpack.c.b16 %v843, %v842
          %v854 = vpack.c.b16 %v845, %v844
          %v855 = vpack.c.b16 %v847, %v846
          %v880 = vunpack.c.l.b16 %v800
          %v881 = vunpack.c.l.b16 %v801
          %v882 = vunpack.c.l.b16 %v802
          %v883 = vunpack.c.l.b16 %v803
          %v884 = vunpack.c.l.b16 %v804
          %v885 = vunpack.c.l.b16 %v805
          %v886 = vunpack.c.l.b16 %v806
          %v887 = vunpack.c.l.b16 %v807
          %v888 = vunpack.c.l.b16 %v808
          %v889 = vunpack.c.l.b16 %v809
          %v890 = vunpack.c.l.b16 %v810
          %v891 = vunpack.c.l.b16 %v811
          %v892 = vunpack.c.l.b16 %v812
          %v893 = vunpack.c.l.b16 %v813
          %v894 = vunpack.c.l.b16 %v814
          %v895 = vunpack.c.l.b16 %v815
          %v896 = vpack.c.b16 %v881, %v880
          %v897 = vpack.c.b16 %v883, %v882
          %v898 = vpack.c.b16 %v885, %v884
          %v899 = vpack.c.b16 %v887, %v886
          %v900 = vpack.c.b16 %v889, %v888
          %v901 = vpack.c.b16 %v891, %v890
          %v902 = vpack.c.b16 %v893, %v892
          %v903 = vpack.c.b16 %v895, %v894
          %912 = vmatpush.bf16.msra.mxu0 %v903
          %913 = vmatpush.bf16.msra.mxu0 %v902
          %914 = vmatpush.bf16.msra.mxu0 %v901
          %915 = vmatpush.bf16.msra.mxu0 %v900
          %916 = vmatpush.bf16.msra.mxu0 %v899
          %917 = vmatpush.bf16.msra.mxu0 %v898
          %918 = vmatpush.bf16.msra.mxu0 %v897
          %919 = vmatpush.bf16.msra.mxu0 %v896
          %920 = vmatmul.bf16.gmra.mxu0 %v848
          %v921 = vpop.f32.mrf.mxu0
          %v922 = vadd.f32 0.0, %v921
          %v923 = vpop.f32.mrf.mxu0
          %v924 = vadd.f32 0.0, %v923
          %925 = vmatmul.bf16.gmra.mxu0 %v849
          %v926 = vpop.f32.mrf.mxu0
          %v927 = vadd.f32 0.0, %v926
          %v928 = vpop.f32.mrf.mxu0
          %v929 = vadd.f32 0.0, %v928
          %930 = vmatmul.bf16.gmra.mxu0 %v850
          %v931 = vpop.f32.mrf.mxu0
          %v932 = vadd.f32 0.0, %v931
          %v933 = vpop.f32.mrf.mxu0
          %v934 = vadd.f32 0.0, %v933
          %935 = vmatmul.bf16.gmra.mxu0 %v851
          %v936 = vpop.f32.mrf.mxu0
          %v937 = vadd.f32 0.0, %v936
          %v938 = vpop.f32.mrf.mxu0
          %v939 = vadd.f32 0.0, %v938
          %940 = vmatmul.bf16.gmra.mxu0 %v852
          %v941 = vpop.f32.mrf.mxu0
          %v942 = vadd.f32 0.0, %v941
          %v943 = vpop.f32.mrf.mxu0
          %v944 = vadd.f32 0.0, %v943
          %945 = vmatmul.bf16.gmra.mxu0 %v853
          %v946 = vpop.f32.mrf.mxu0
          %v947 = vadd.f32 0.0, %v946
          %v948 = vpop.f32.mrf.mxu0
          %v949 = vadd.f32 0.0, %v948
          %950 = vmatmul.bf16.gmra.mxu0 %v854
          %v951 = vpop.f32.mrf.mxu0
          %v952 = vadd.f32 0.0, %v951
          %v953 = vpop.f32.mrf.mxu0
          %v954 = vadd.f32 0.0, %v953
          %955 = vmatmul.bf16.gmra.mxu0 %v855
          %v956 = vpop.f32.mrf.mxu0
          %v957 = vadd.f32 0.0, %v956
          %v958 = vpop.f32.mrf.mxu0
          %v959 = vadd.f32 0.0, %v958
          %960 = vdwg.mxu0
          %v961 = vld [vmem:[#allocation2] sm:$0xff]
          %v962 = vld [vmem:[#allocation2 + $0x8] sm:$0xff]
          %v963 = vld [vmem:[#allocation2 + $0x10] sm:$0xff]
          %v964 = vld [vmem:[#allocation2 + $0x18] sm:$0xff]
          %v965 = vld [vmem:[#allocation2 + $0x20] sm:$0xff]
          %v966 = vld [vmem:[#allocation2 + $0x28] sm:$0xff]
          %v967 = vld [vmem:[#allocation2 + $0x30] sm:$0xff]
          %v968 = vld [vmem:[#allocation2 + $0x38] sm:$0xff]
          %v969 = vld [vmem:[#allocation2 + $0x40] sm:$0xff]
          %v970 = vld [vmem:[#allocation2 + $0x48] sm:$0xff]
          %v971 = vld [vmem:[#allocation2 + $0x50] sm:$0xff]
          %v972 = vld [vmem:[#allocation2 + $0x58] sm:$0xff]
          %v973 = vld [vmem:[#allocation2 + $0x60] sm:$0xff]
          %v974 = vld [vmem:[#allocation2 + $0x68] sm:$0xff]
          %v975 = vld [vmem:[#allocation2 + $0x70] sm:$0xff]
          %v976 = vld [vmem:[#allocation2 + $0x78] sm:$0xff]
          %v977 = vadd.f32 %v961, %v922
          %v978 = vadd.f32 %v962, %v924
          %v979 = vadd.f32 %v963, %v927
          %v980 = vadd.f32 %v964, %v929
          %v981 = vadd.f32 %v965, %v932
          %v982 = vadd.f32 %v966, %v934
          %v983 = vadd.f32 %v967, %v937
          %v984 = vadd.f32 %v968, %v939
          %v985 = vadd.f32 %v969, %v942
          %v986 = vadd.f32 %v970, %v944
          %v987 = vadd.f32 %v971, %v947
          %v988 = vadd.f32 %v972, %v949
          %v989 = vadd.f32 %v973, %v952
          %v990 = vadd.f32 %v974, %v954
          %v991 = vadd.f32 %v975, %v957
          %v992 = vadd.f32 %v976, %v959
          %v993 = vmax.f32 %v977, 0.0
          %v994 = vmax.f32 %v978, 0.0
          %v995 = vmax.f32 %v979, 0.0
          %v996 = vmax.f32 %v980, 0.0
          %v997 = vmax.f32 %v981, 0.0
          %v998 = vmax.f32 %v982, 0.0
          %v999 = vmax.f32 %v983, 0.0
          %v1000 = vmax.f32 %v984, 0.0
          %v1001 = vmax.f32 %v985, 0.0
          %v1002 = vmax.f32 %v986, 0.0
          %v1003 = vmax.f32 %v987, 0.0
          %v1004 = vmax.f32 %v988, 0.0
          %v1005 = vmax.f32 %v989, 0.0
          %v1006 = vmax.f32 %v990, 0.0
          %v1007 = vmax.f32 %v991, 0.0
          %v1008 = vmax.f32 %v992, 0.0
          %v1009 = vpack.c.bf16 %v993, %v993
          %v1010 = vpack.c.bf16 %v994, %v994
          %v1011 = vpack.c.bf16 %v995, %v995
          %v1012 = vpack.c.bf16 %v996, %v996
          %v1013 = vpack.c.bf16 %v997, %v997
          %v1014 = vpack.c.bf16 %v998, %v998
          %v1015 = vpack.c.bf16 %v999, %v999
          %v1016 = vpack.c.bf16 %v1000, %v1000
          %v1017 = vpack.c.bf16 %v1001, %v1001
          %v1018 = vpack.c.bf16 %v1002, %v1002
          %v1019 = vpack.c.bf16 %v1003, %v1003
          %v1020 = vpack.c.bf16 %v1004, %v1004
          %v1021 = vpack.c.bf16 %v1005, %v1005
          %v1022 = vpack.c.bf16 %v1006, %v1006
          %v1023 = vpack.c.bf16 %v1007, %v1007
          %v1024 = vpack.c.bf16 %v1008, %v1008
          %1025 = vst [vmem:[#allocation16] sm:$0xf] %v1009
          %1026 = vst [vmem:[#allocation16 + $0x4] sm:$0xf] %v1010
          %1027 = vst [vmem:[#allocation16 + $0x8] sm:$0xf] %v1011
          %1028 = vst [vmem:[#allocation16 + $0xc] sm:$0xf] %v1012
          %1029 = vst [vmem:[#allocation16 + $0x10] sm:$0xf] %v1013
          %1030 = vst [vmem:[#allocation16 + $0x14] sm:$0xf] %v1014
          %1031 = vst [vmem:[#allocation16 + $0x18] sm:$0xf] %v1015
          %1032 = vst [vmem:[#allocation16 + $0x1c] sm:$0xf] %v1016
          %1033 = vst [vmem:[#allocation16 + $0x20] sm:$0xf] %v1017
          %1034 = vst [vmem:[#allocation16 + $0x24] sm:$0xf] %v1018
          %1035 = vst [vmem:[#allocation16 + $0x28] sm:$0xf] %v1019
          %1036 = vst [vmem:[#allocation16 + $0x2c] sm:$0xf] %v1020
          %1037 = vst [vmem:[#allocation16 + $0x30] sm:$0xf] %v1021
          %1038 = vst [vmem:[#allocation16 + $0x34] sm:$0xf] %v1022
          %1039 = vst [vmem:[#allocation16 + $0x38] sm:$0xf] %v1023
          %1040 = vst [vmem:[#allocation16 + $0x3c] sm:$0xf] %v1024
        $region72: #{tpu_custom_call.1} parent=39 // pred_fallthru
          _
        // Predicated region
        $region73: #{tpu_custom_call.1} parent=39 // pred_check
          %p1041 = pneg %p207
        $region74: #{tpu_custom_call.1} parent=39 // pred_check_branch
          %1043 = sbr.rel (%p1041) target = $region76
        $region75: #{tpu_custom_call.1} parent=39 // pred_region
          %s1044 = smul.u32 16, %s43
          %1046 = vsyncadd [#allocation9], 0
          %s1047 = smul.addr %s1044, 4
          %s1048 = scalar_lea.hbm %s8, %s1047
          %s1049 = sshll.u32 [#allocation16], 4
          %s1050 = int_to_ptr.vmem [resolvable:$true] %s1049
          %s1051 = sshll.u32 %s1048, 4
          %s1052 = int_to_ptr.hbm [resolvable:$true] %s1051
          %1057 = dma.vmem_to_hbm [thread:$0]  %s1050, 1024, %s1052, [#allocation9], 64, 64, 4
        $region76: #{tpu_custom_call.1} parent=39 // pred_fallthru
          _
        // Predicated region
        $region77: #{tpu_custom_call.1} parent=39 // pred_check
          %p1058 = pneg %p207
        $region78: #{tpu_custom_call.1} parent=39 // pred_check_branch
          %1060 = sbr.rel (%p1058) target = $region80
        $region79: #{tpu_custom_call.1} parent=39 // pred_region
          %1062 = dma.done [#allocation9], 1024
        $region80: #{tpu_custom_call.1} parent=39 // pred_fallthru
          _
      $region40: #{tpu_custom_call.1} parent=5 // pred_fallthru
        _
      %p1063 = scmp.le.s32.totalorder 2, %s34
      // Predicated region
      $region81: #{tpu_custom_call.1} parent=5 // pred_check
        %p1064 = pneg %p1063
      $region82: #{tpu_custom_call.1} parent=5 // pred_check_branch
        %1066 = sbr.rel (%p1064) target = $region84
      $region83: #{tpu_custom_call.1} parent=5 // pred_region
        %s1067 = ssub.s32 %s34, 2
      $region84: #{tpu_custom_call.1} parent=5 // pred_fallthru
        _
    $region6: #{tpu_custom_call.1} parent=1 // loop_footer
      %s38 = sadd.s32 1, %s34
    $region7: #{tpu_custom_call.1} parent=1 // loop_footer_branch
      %33 = sbr.rel target = $region3
    $region8: #{tpu_custom_call.1} parent=1 // loop_exit
      _
    %1068 = vsyncpa [#allocation8], 1
    %s1069 = scalar_lea.sflag [#allocation8], 1
    %1070 = vsyncpa %s1069, 1
    %1071 = vsyncpa [#allocation11], 1
    %1072 = vsyncpa [#allocation14], 1
    %1073 = vsyncpa [#allocation9], 1
    %s1074 = scalar_lea.sflag [#allocation9], 1
    %1075 = vsyncpa %s1074, 1

</llo_original>
